<compile_context>
chip_gen: v5e
topology: v5e:2x2
jax: 0.10.0
libtpu: 0.0.40
codegen_flags: <defaults>
</compile_context>

<pallas_src>
import functools

import jax
import jax.numpy as jnp
from jax.experimental import pallas as pl
from jax.experimental.pallas import tpu as pltpu


def _round_up(v, m):
    return (v + m - 1) // m * m


def _cdiv(a, b):
    return -(-a // b)


# ----------------------------------------------------------------------------
# Per-generation tile planning
# ----------------------------------------------------------------------------
def _plan_tiles(batch, feat_dim, c_pad):
    try:
        info = pltpu.get_tpu_info()
        vmem_cap = int(getattr(info, "vmem_capacity_bytes", 64 * 1024 * 1024))
    except Exception:  # pragma: no cover - be robust if the query is unavailable
        vmem_cap = 64 * 1024 * 1024
    big_vmem = vmem_cap >= 100 * 1024 * 1024              # v5e / v6e: 128 MiB physical VMEM
    vmem_limit = (64 if big_vmem else 48) * 1024 * 1024   # keep headroom inside v7x's 64 MiB

    per_tile_cap = 512 if big_vmem else 256     # big tiles amortize ~0.35us/step overhead
    single_tile_cap = 512 if big_vmem else 128  # on v7x prefer >=2 tiles so both TCs work

    if batch <= single_tile_cap:
        tile_b = _round_up(max(batch, 1), 8)
    else:
        n = max(2, _cdiv(batch, per_tile_cap))
        if not big_vmem:
            n = _round_up(n, 2)                 # even tile count for v7x's two TensorCores
        tile_b = _round_up(_cdiv(batch, n), 32)

    # Shrink tile_b if the double-buffered working set would blow the VMEM budget.
    def est(tb):
        xb = tb * feat_dim * 4 * 2              # f32 x tile, double buffered
        ob = tb * c_pad * 4 * 2                 # logits tile (lane padded), double buffered
        pb = feat_dim * c_pad * 2               # resident bf16 points (single buffer)
        tmp = 8 * tb * c_pad * 4 + tb * feat_dim * 6   # in-flight f32 temporaries + bf16 x
        return xb + ob + pb + tmp

    while tile_b > 8 and est(tile_b) > int(vmem_limit * 0.7):
        tile_b = max(8, _round_up(tile_b // 2, 8))

    b_pad = _round_up(batch, tile_b)
    return tile_b, b_pad, vmem_limit


# ----------------------------------------------------------------------------
# Kernels
# ----------------------------------------------------------------------------
def _logits_l2(x_ref, pT_ref, p2_ref, feat_dim):
    """dot on the MXU (bf16 in, f32 acc); l2 via the expanded form, x^2 from f32 x."""
    xf = x_ref[...]                                         # f32 (TB, D)
    dot = jax.lax.dot_general(
        xf.astype(jnp.bfloat16), pT_ref[...],               # (TB, D) @ (D, C_pad)
        (((1,), (0,)), ((), ())), preferred_element_type=jnp.float32)
    x2 = jnp.sum(xf * xf, axis=1, keepdims=True)            # (TB, 1) full precision
    inv_d = 1.0 / float(feat_dim)
    # clamp: expanded form can dip slightly negative from cancellation
    l2 = jnp.maximum((x2 - 2.0 * dot + p2_ref[...]) * inv_d, 0.0)
    return dot - l2, l2


def _logits_only_kernel(x_ref, p_ref, p2_ref, logits_ref, *, feat_dim, c_out):
    logits, _ = _logits_l2(x_ref, p_ref, p2_ref, feat_dim)
    logits_ref[...] = logits[:, :c_out]


def _fused_loss_kernel(labels_ref, x_ref, p_ref, p2_ref,
                       logits_ref, part_ref, *,
                       c_rest, c_out, batch, tile_b, feat_dim, r1, r2):
    logits, l2 = _logits_l2(x_ref, p_ref, p2_ref, feat_dim)
    logits_ref[...] = logits[:, :c_out]       # narrow writeback: real classes + rest only

    tb, c_pad = logits.shape
    labels = labels_ref[...]                                          # (TB, 1) int32

    # rows of the (padded) batch that are real samples in this tile
    row = (jax.lax.broadcasted_iota(jnp.int32, (tb, 1), 0)
           + pl.program_id(0) * tile_b)
    valid = (row < batch).astype(jnp.float32)                         # (TB, 1)

    cls_ids = jax.lax.broadcasted_iota(jnp.int32, (tb, c_pad), 1)
    onehot = (labels == cls_ids).astype(jnp.float32) * valid          # (TB, C_pad)
    nothot = valid - onehot                                           # (TB, C_pad)

    z_rest = logits[:, c_rest:c_rest + 1]                             # (TB, 1)
    d_rest = l2[:, c_rest:c_rest + 1]                                 # (TB, 1)

    # per-class 2-way cross entropy on [z_rest, z_c]; softplus form uses one exp + one
    # log per element instead of two exps + one log (fewer EUP pushes).
    lse = (jnp.maximum(z_rest, logits)
           + jnp.log1p(jnp.exp(-jnp.abs(z_rest - logits))))
    z_tgt = onehot * logits + nothot * z_rest                         # valid-masked
    ce = valid * lse - z_tgt                                          # == valid*(lse - z_tgt)

    relu = lambda v: jnp.maximum(v, 0.0)
    open_t = nothot * relu(d_rest - r1 + 1.0)   # u_margin(r1, u_u_dist, +1)
    km1_t = onehot * relu(l2 - r2 + 1.0)        # k_margin(r2, k_k_dist, +1)
    km2_t = nothot * relu(r2 - l2 + 1.0)        # k_margin(r2, u_k_dist, -1)

    part = jnp.concatenate(
        [
            jnp.sum(ce, axis=0, keepdims=True),       # row 0: ce numerator
            jnp.sum(onehot, axis=0, keepdims=True),   # row 1: n_k per class
            jnp.sum(open_t, axis=0, keepdims=True),   # row 2: open-risk numerator
            jnp.sum(km1_t, axis=0, keepdims=True),    # row 3: k-margin numerator
            jnp.sum(km2_t, axis=0, keepdims=True),    # row 4: u-margin numerator
        ],
        axis=0,
    )                                                                  # (5, C_pad)
    part_ref[...] = part[None]


# ----------------------------------------------------------------------------
# Tiny JAX finalization (per-class partials -> scalar loss)
# ----------------------------------------------------------------------------
def _finalize_loss(partials, *, num_classes, batch, alpha, beta):
    tot = jnp.sum(partials, axis=0)                  # (5, C_pad)
    ce_s = tot[0, :num_classes]
    n_k = tot[1, :num_classes]
    open_s = tot[2, :num_classes]
    km1_s = tot[3, :num_classes]
    km2_s = tot[4, :num_classes]
    n_u = float(batch) - n_k
    # pd.get_dummies only iterates classes present in the batch -> mask absent ones.
    present = (n_k > 0.0).astype(jnp.float32)
    # TODO(synk): PyTorch yields NaN when a per-class subset is empty (empty .mean());
    # denominators are guarded with max(., 1) here instead.
    cla = jnp.sum(present * ce_s) / float(batch)
    ge = jnp.sum(present * (
        (1.0 - alpha) * open_s / jnp.maximum(n_u, 1.0)
        + alpha * (km1_s / jnp.maximum(n_k, 1.0)
                   + km2_s / jnp.maximum(n_u, 1.0))))
    return (1.0 - beta) * cla + beta * ge


# ----------------------------------------------------------------------------
# Wrapper
# ----------------------------------------------------------------------------
def one_rest_forward(x, labels, points_t_bf16, p2, *, num_classes, feat_dim,
                     radius1, radius2, alpha, beta):
    batch = x.shape[0]
    c_pad = points_t_bf16.shape[1]
    c_out = num_classes + 1
    tile_b, b_pad, vmem_limit = _plan_tiles(batch, feat_dim, c_pad)
    num_tiles = b_pad // tile_b

    x = x.astype(jnp.float32)                  # no-op for f32 inputs; kernel casts to bf16
    if b_pad != batch:                         # ragged batch only; common case has no pass
        x = jnp.pad(x, ((0, b_pad - batch), (0, 0)))

    compiler_params = pltpu.CompilerParams(
        dimension_semantics=("parallel",),
        vmem_limit_bytes=vmem_limit)

    resident_kw = {}
    if hasattr(pl, "Buffered"):
        resident_kw["pipeline_mode"] = pl.Buffered(1)   # points / p^2 are grid-resident

    x_spec = pl.BlockSpec((tile_b, feat_dim), lambda i: (i, 0))
    p_spec = pl.BlockSpec((feat_dim, c_pad), lambda i: (0, 0), **resident_kw)
    p2_spec = pl.BlockSpec((1, c_pad), lambda i: (0, 0), **resident_kw)
    logits_spec = pl.BlockSpec((tile_b, c_out), lambda i: (i, 0))

    if labels is None:
        # inference path: no dist_l2 / loss-partial writeback at all
        logits_pad = pl.pallas_call(
            functools.partial(_logits_only_kernel, feat_dim=feat_dim, c_out=c_out),
            grid=(num_tiles,),
            in_specs=[x_spec, p_spec, p2_spec],
            out_specs=logits_spec,
            out_shape=jax.ShapeDtypeStruct((b_pad, c_out), jnp.float32),
            compiler_params=compiler_params,
        )(x, points_t_bf16, p2)
        logits = logits_pad if b_pad == batch else logits_pad[:batch]
        return logits, jnp.float32(0.0)

    labels_p = labels.astype(jnp.int32).reshape(batch, 1)
    if b_pad != batch:
        labels_p = jnp.pad(labels_p, ((0, b_pad - batch), (0, 0)), constant_values=-1)
    labels_spec = pl.BlockSpec((tile_b, 1), lambda i: (i, 0))
    part_spec = pl.BlockSpec((1, 5, c_pad), lambda i: (i, 0, 0))

    kernel = functools.partial(
        _fused_loss_kernel, c_rest=num_classes, c_out=c_out, batch=batch,
        tile_b=tile_b, feat_dim=feat_dim, r1=float(radius1), r2=float(radius2))
    logits_pad, partials = pl.pallas_call(
        kernel,
        grid=(num_tiles,),
        in_specs=[labels_spec, x_spec, p_spec, p2_spec],
        out_specs=(logits_spec, part_spec),
        out_shape=(jax.ShapeDtypeStruct((b_pad, c_out), jnp.float32),
                   jax.ShapeDtypeStruct((num_tiles, 5, c_pad), jnp.float32)),
        compiler_params=compiler_params,
    )(labels_p, x, points_t_bf16, p2)

    loss = _finalize_loss(partials, num_classes=num_classes, batch=batch,
                          alpha=alpha, beta=beta)
    logits = logits_pad if b_pad == batch else logits_pad[:batch]
    return logits, loss


# ----------------------------------------------------------------------------
# Module wrapper
# ----------------------------------------------------------------------------
class OneRestLoss:
    def __init__(self, *, num_classes, feat_dim, alpha, beta, key):
        self.a = float(alpha)
        self.b = float(beta)
        self.num_classes = int(num_classes)
        self.feat_dim = int(feat_dim)
        kp, _ = jax.random.split(key)
        # Dist centers: num_classes+1 reciprocal points, last one is the "rest" point.
        self.points = jax.random.normal(
            kp, (num_classes + 1, feat_dim), dtype=jnp.float32) * 0.1
        self.radius1 = 0.5
        self.radius2 = 1.0
        # Precomputed, class-dim-padded (lane-dense) kernel parameters:
        #   points pre-transposed once to (feat_dim, C_pad) bf16 = natural MXU layout,
        #   |p|^2 computed from the f32 points for full-precision l2.
        c_pad = _round_up(num_classes + 1, 128)
        pts_pad = jnp.zeros((c_pad, feat_dim), jnp.float32)
        pts_pad = pts_pad.at[:num_classes + 1].set(self.points)
        self._points_t_bf16 = pts_pad.T.astype(jnp.bfloat16)         # (D, C_pad)
        self._p2 = jnp.sum(pts_pad * pts_pad, axis=1, keepdims=True).T  # (1, C_pad) f32

    def __call__(self, x, y=None, labels=None):
        del y  # unused; kept for API parity with the PyTorch module
        return one_rest_forward(
            x, labels, self._points_t_bf16, self._p2,
            num_classes=self.num_classes, feat_dim=self.feat_dim,
            radius1=self.radius1, radius2=self.radius2,
            alpha=self.a, beta=self.b)


if __name__ == "__main__":
    key = jax.random.PRNGKey(0)
    kx, kmod = jax.random.split(key)

    batch = 8
    feat_dim = 32
    num_classes = 4

    x = jax.random.normal(kx, (batch, feat_dim), dtype=jnp.float32)
    labels = jnp.array([0, 1, 2, 3, 0, 1, 2, 3], dtype=jnp.int32)

    module = OneRestLoss(num_classes=num_classes, feat_dim=feat_dim,
                         alpha=0.5, beta=0.3, key=kmod)

    # training path (fused logits + loss kernel)
    logits, loss = module(x, labels=labels)
    jax.block_until_ready((logits, loss))
    assert logits.shape == (batch, num_classes + 1)
    assert bool(jnp.isfinite(loss))

    # inference path (logits-only kernel, no l2 / partial writeback)
    logits_inf, loss_inf = module(x)
    jax.block_until_ready((logits_inf, loss_inf))
    assert logits_inf.shape == (batch, num_classes + 1)
    assert float(loss_inf) == 0.0

    print("KERNEL_OK")
</pallas_src>

<mosaic_0001>
module attributes {stable_mosaic.version = 11 : i64} {
  func.func @_fused_loss_kernel(%arg0: i32, %arg1: memref<8x1xi32, #tpu.memory_space<vmem>>, %arg2: memref<8x32xf32, #tpu.memory_space<vmem>>, %arg3: memref<32x128xbf16, #tpu.memory_space<vmem>>, %arg4: memref<1x128xf32, #tpu.memory_space<vmem>>, %arg5: memref<8x5xf32, #tpu.memory_space<vmem>>, %arg6: memref<1x5x128xf32, #tpu.memory_space<vmem>>) attributes {dimension_semantics = [#tpu.dimension_semantics<parallel>], iteration_bounds = array<i64: 1>, scalar_prefetch = 0 : i64, scratch_operands = 0 : i64, tpu.core_type = #tpu.core_type<tc>, window_params = [{transform_indices = @transform_0, window_bounds = array<i64: 8, 1>}, {transform_indices = @transform_1, window_bounds = array<i64: 8, 32>}, {pipeline_mode = #tpu.pipeline_mode<synchronous>, transform_indices = @transform_2, window_bounds = array<i64: 32, 128>}, {pipeline_mode = #tpu.pipeline_mode<synchronous>, transform_indices = @transform_3, window_bounds = array<i64: 1, 128>}, {transform_indices = @transform_4, window_bounds = array<i64: 8, 5>}, {transform_indices = @transform_5, window_bounds = array<i64: 1, 5, 128>}]} {
    %c0 = arith.constant 0 : index
    %c0_0 = arith.constant 0 : index
    %0 = vector.load %arg2[%c0, %c0_0] : memref<8x32xf32, #tpu.memory_space<vmem>>, vector<8x32xf32>
    %1 = arith.truncf %0 : vector<8x32xf32> to vector<8x32xbf16>
    %c0_1 = arith.constant 0 : index
    %c0_2 = arith.constant 0 : index
    %2 = vector.load %arg3[%c0_1, %c0_2] : memref<32x128xbf16, #tpu.memory_space<vmem>>, vector<32x128xbf16>
    %cst = arith.constant dense<0.000000e+00> : vector<8x128xf32>
    %3 = tpu.matmul %1, %2, %cst {dimension_numbers = #tpu.dot_dimension_numbers<[1], [0], [0], [1], [0, 0, 1, 1], [], []>} : vector<8x32xbf16>, vector<32x128xbf16>, vector<8x128xf32> -> vector<8x128xf32>
    %4 = arith.mulf %0, %0 : vector<8x32xf32>
    %cst_3 = arith.constant dense<0.000000e+00> : vector<8xf32>
    %5 = vector.multi_reduction <add>, %4, %cst_3 [1] : vector<8x32xf32> to vector<8xf32>
    %6 = vector.shape_cast %5 : vector<8xf32> to vector<8x1xf32>
    %cst_4 = arith.constant 2.000000e+00 : f32
    %7 = vector.broadcast %cst_4 : f32 to vector<8x128xf32>
    %8 = arith.mulf %7, %3 : vector<8x128xf32>
    %9 = vector.broadcast %6 : vector<8x1xf32> to vector<8x128xf32>
    %10 = arith.subf %9, %8 : vector<8x128xf32>
    %c0_5 = arith.constant 0 : index
    %c0_6 = arith.constant 0 : index
    %11 = vector.load %arg4[%c0_5, %c0_6] : memref<1x128xf32, #tpu.memory_space<vmem>>, vector<1x128xf32>
    %12 = vector.broadcast %11 : vector<1x128xf32> to vector<8x128xf32>
    %13 = arith.addf %10, %12 : vector<8x128xf32>
    %cst_7 = arith.constant 3.125000e-02 : f32
    %14 = vector.broadcast %cst_7 : f32 to vector<8x128xf32>
    %15 = arith.mulf %13, %14 : vector<8x128xf32>
    %cst_8 = arith.constant 0.000000e+00 : f32
    %16 = vector.broadcast %cst_8 : f32 to vector<8x128xf32>
    %17 = arith.maximumf %15, %16 : vector<8x128xf32>
    %18 = arith.subf %3, %17 : vector<8x128xf32>
    %19 = vector.extract_strided_slice %18 {offsets = [0, 0], sizes = [8, 5], strides = [1, 1]} : vector<8x128xf32> to vector<8x5xf32>
    %c0_9 = arith.constant 0 : index
    %c0_10 = arith.constant 0 : index
    %20 = vector.load %arg5[%c0_9, %c0_10] : memref<8x5xf32, #tpu.memory_space<vmem>>, vector<8x5xf32>
    tpu.vector_store %arg5[%c0_9, %c0_10], %19 {strides = array<i32>} : memref<8x5xf32, #tpu.memory_space<vmem>>, vector<8x5xf32>,
    %c0_11 = arith.constant 0 : index
    %c0_12 = arith.constant 0 : index
    %21 = vector.load %arg1[%c0_11, %c0_12] : memref<8x1xi32, #tpu.memory_space<vmem>>, vector<8x1xi32>
    %22 = tpu.iota {dimensions = array<i32: 0>} : vector<8x1xi32>
    %c8_i32 = arith.constant 8 : i32
    %23 = arith.muli %arg0, %c8_i32 : i32
    %24 = vector.broadcast %23 : i32 to vector<8x1xi32>
    %25 = arith.addi %22, %24 : vector<8x1xi32>
    %c8_i32_13 = arith.constant 8 : i32
    %26 = vector.broadcast %c8_i32_13 : i32 to vector<8x1xi32>
    %27 = arith.cmpi slt, %25, %26 : vector<8x1xi32>
    %28 = arith.extui %27 : vector<8x1xi1> to vector<8x1xi32>
    %29 = arith.sitofp %28 : vector<8x1xi32> to vector<8x1xf32>
    %30 = tpu.iota {dimensions = array<i32: 1>} : vector<8x128xi32>
    %31 = vector.broadcast %21 : vector<8x1xi32> to vector<8x128xi32>
    %32 = arith.cmpi eq, %31, %30 : vector<8x128xi32>
    %33 = arith.extui %32 : vector<8x128xi1> to vector<8x128xi32>
    %34 = arith.sitofp %33 : vector<8x128xi32> to vector<8x128xf32>
    %35 = vector.broadcast %29 : vector<8x1xf32> to vector<8x128xf32>
    %36 = arith.mulf %34, %35 : vector<8x128xf32>
    %37 = vector.broadcast %29 : vector<8x1xf32> to vector<8x128xf32>
    %38 = arith.subf %37, %36 : vector<8x128xf32>
    %39 = vector.extract_strided_slice %18 {offsets = [0, 4], sizes = [8, 1], strides = [1, 1]} : vector<8x128xf32> to vector<8x1xf32>
    %40 = vector.extract_strided_slice %17 {offsets = [0, 4], sizes = [8, 1], strides = [1, 1]} : vector<8x128xf32> to vector<8x1xf32>
    %41 = vector.broadcast %39 : vector<8x1xf32> to vector<8x128xf32>
    %42 = arith.maximumf %41, %18 : vector<8x128xf32>
    %43 = vector.broadcast %39 : vector<8x1xf32> to vector<8x128xf32>
    %44 = arith.subf %43, %18 : vector<8x128xf32>
    %45 = math.absf %44 : vector<8x128xf32>
    %cst_14 = arith.constant 0.000000e+00 : f32
    %46 = vector.broadcast %cst_14 : f32 to vector<8x128xf32>
    %47 = arith.subf %46, %45 : vector<8x128xf32>
    %48 = math.exp %47 : vector<8x128xf32>
    %49 = math.log1p %48 : vector<8x128xf32>
    %50 = arith.addf %42, %49 : vector<8x128xf32>
    %51 = arith.mulf %36, %18 : vector<8x128xf32>
    %52 = vector.broadcast %39 : vector<8x1xf32> to vector<8x128xf32>
    %53 = arith.mulf %38, %52 : vector<8x128xf32>
    %54 = arith.addf %51, %53 : vector<8x128xf32>
    %55 = vector.broadcast %29 : vector<8x1xf32> to vector<8x128xf32>
    %56 = arith.mulf %55, %50 : vector<8x128xf32>
    %57 = arith.subf %56, %54 : vector<8x128xf32>
    %cst_15 = arith.constant 5.000000e-01 : f32
    %58 = vector.broadcast %cst_15 : f32 to vector<8x1xf32>
    %59 = arith.subf %40, %58 : vector<8x1xf32>
    %cst_16 = arith.constant 1.000000e+00 : f32
    %60 = vector.broadcast %cst_16 : f32 to vector<8x1xf32>
    %61 = arith.addf %59, %60 : vector<8x1xf32>
    %cst_17 = arith.constant 0.000000e+00 : f32
    %62 = vector.broadcast %cst_17 : f32 to vector<8x1xf32>
    %63 = arith.maximumf %61, %62 : vector<8x1xf32>
    %64 = vector.broadcast %63 : vector<8x1xf32> to vector<8x128xf32>
    %65 = arith.mulf %38, %64 : vector<8x128xf32>
    %cst_18 = arith.constant 1.000000e+00 : f32
    %66 = vector.broadcast %cst_18 : f32 to vector<8x128xf32>
    %67 = arith.subf %17, %66 : vector<8x128xf32>
    %cst_19 = arith.constant 1.000000e+00 : f32
    %68 = vector.broadcast %cst_19 : f32 to vector<8x128xf32>
    %69 = arith.addf %67, %68 : vector<8x128xf32>
    %cst_20 = arith.constant 0.000000e+00 : f32
    %70 = vector.broadcast %cst_20 : f32 to vector<8x128xf32>
    %71 = arith.maximumf %69, %70 : vector<8x128xf32>
    %72 = arith.mulf %36, %71 : vector<8x128xf32>
    %cst_21 = arith.constant 1.000000e+00 : f32
    %73 = vector.broadcast %cst_21 : f32 to vector<8x128xf32>
    %74 = arith.subf %73, %17 : vector<8x128xf32>
    %cst_22 = arith.constant 1.000000e+00 : f32
    %75 = vector.broadcast %cst_22 : f32 to vector<8x128xf32>
    %76 = arith.addf %74, %75 : vector<8x128xf32>
    %cst_23 = arith.constant 0.000000e+00 : f32
    %77 = vector.broadcast %cst_23 : f32 to vector<8x128xf32>
    %78 = arith.maximumf %76, %77 : vector<8x128xf32>
    %79 = arith.mulf %38, %78 : vector<8x128xf32>
    %cst_24 = arith.constant dense<0.000000e+00> : vector<128xf32>
    %80 = vector.multi_reduction <add>, %57, %cst_24 [0] : vector<8x128xf32> to vector<128xf32>
    %81 = vector.shape_cast %80 : vector<128xf32> to vector<1x128xf32>
    %cst_25 = arith.constant dense<0.000000e+00> : vector<128xf32>
    %82 = vector.multi_reduction <add>, %36, %cst_25 [0] : vector<8x128xf32> to vector<128xf32>
    %83 = vector.shape_cast %82 : vector<128xf32> to vector<1x128xf32>
    %cst_26 = arith.constant dense<0.000000e+00> : vector<128xf32>
    %84 = vector.multi_reduction <add>, %65, %cst_26 [0] : vector<8x128xf32> to vector<128xf32>
    %85 = vector.shape_cast %84 : vector<128xf32> to vector<1x128xf32>
    %cst_27 = arith.constant dense<0.000000e+00> : vector<128xf32>
    %86 = vector.multi_reduction <add>, %72, %cst_27 [0] : vector<8x128xf32> to vector<128xf32>
    %87 = vector.shape_cast %86 : vector<128xf32> to vector<1x128xf32>
    %cst_28 = arith.constant dense<0.000000e+00> : vector<128xf32>
    %88 = vector.multi_reduction <add>, %79, %cst_28 [0] : vector<8x128xf32> to vector<128xf32>
    %89 = vector.shape_cast %88 : vector<128xf32> to vector<1x128xf32>
    %90 = tpu.concatenate %81, %83, %85, %87, %89 in 0 : vector<1x128xf32>, vector<1x128xf32>, vector<1x128xf32>, vector<1x128xf32>, vector<1x128xf32> -> vector<5x128xf32>
    %91 = vector.shape_cast %90 : vector<5x128xf32> to vector<1x5x128xf32>
    %c0_29 = arith.constant 0 : index
    %c0_30 = arith.constant 0 : index
    %c0_31 = arith.constant 0 : index
    %92 = vector.load %arg6[%c0_29, %c0_30, %c0_31] : memref<1x5x128xf32, #tpu.memory_space<vmem>>, vector<1x5x128xf32>
    tpu.vector_store %arg6[%c0_29, %c0_30, %c0_31], %91 {strides = array<i32>} : memref<1x5x128xf32, #tpu.memory_space<vmem>>, vector<1x5x128xf32>,
    return
  }
  func.func @transform_0(%arg0: i32) -> (i32, i32) {
    %c0_i32 = arith.constant 0 : i32
    %c0_i32_0 = arith.constant 0 : i32
    return %arg0, %c0_i32 : i32, i32
  }
  func.func @transform_1(%arg0: i32) -> (i32, i32) {
    %c0_i32 = arith.constant 0 : i32
    %c0_i32_0 = arith.constant 0 : i32
    return %arg0, %c0_i32 : i32, i32
  }
  func.func @transform_2(%arg0: i32) -> (i32, i32) {
    %c0_i32 = arith.constant 0 : i32
    %c0_i32_0 = arith.constant 0 : i32
    %c0_i32_1 = arith.constant 0 : i32
    return %c0_i32, %c0_i32_0 : i32, i32
  }
  func.func @transform_3(%arg0: i32) -> (i32, i32) {
    %c0_i32 = arith.constant 0 : i32
    %c0_i32_0 = arith.constant 0 : i32
    %c0_i32_1 = arith.constant 0 : i32
    return %c0_i32, %c0_i32_0 : i32, i32
  }
  func.func @transform_4(%arg0: i32) -> (i32, i32) {
    %c0_i32 = arith.constant 0 : i32
    %c0_i32_0 = arith.constant 0 : i32
    return %arg0, %c0_i32 : i32, i32
  }
  func.func @transform_5(%arg0: i32) -> (i32, i32, i32) {
    %c0_i32 = arith.constant 0 : i32
    %c0_i32_0 = arith.constant 0 : i32
    %c0_i32_1 = arith.constant 0 : i32
    return %arg0, %c0_i32, %c0_i32_0 : i32, i32, i32
  }
}

</mosaic_0001>

<llo_original>
// kernel: tpu_custom_call.1
$region0: #{tpu_custom_call.1}
  #allocation0 [shape = 'u32[]', space=smem, size = 0x4, offset = 0x4, fixed_abs, tag = 'smem constant byte address 0x4 - core index']
  #allocation1 [shape = 'u32[72,128]{1,0:T(1,128)}', space=vmem, size = 0x9000, scoped, tag = 'internal scratch']
  %s0 = inlined_call_operand.vmem [shape: s32[8,1], index: 0, kind: input, shape index: {}]
  %s1 = inlined_call_operand.vmem [shape: f32[8,32], index: 1, kind: input, shape index: {}]
  %s2 = inlined_call_operand.hbm [shape: bf16[32,128], index: 2, kind: input, shape index: {}]
  %s3 = inlined_call_operand.vmem [shape: f32[1,128], index: 3, kind: input, shape index: {}]
  %s4 = inlined_call_operand.hbm [shape: f32[8,5], index: 4, kind: output, shape index: {0}]
  %s5 = inlined_call_operand.vmem [shape: f32[1,5,128], index: 5, kind: output, shape index: {1}]
  %6 = xla_tuple %s4, %s5
  %s7 = sld [smem:[#allocation0]]
  $region38: #{tpu_custom_call.1} parent=0
    _
  %s9 = ssub.s32 1, %s7
  %s10 = scalar_select 0, %s9, %s7
  $region1: #{tpu_custom_call.1} parent=0
    #allocation2 [shape = 'u8[8192]{0}', space=vmem, size = 0x2000, scoped, tag = 'input window, operand 2, single buffered']
    #allocation3 [shape = 's32[1]{0}', space=sflag, size = 0x4, scoped, tag = 'scoped memory for tpu_custom_call.1']
    #allocation4 [shape = 's32[1]{0}', space=sflag, size = 0x4, scoped, tag = 'scoped memory for tpu_custom_call.1']
    #allocation5 [shape = 'u8[4096]{0}', space=vmem, size = 0x1000, scoped, tag = 'output window, operand 0, single buffered']
    %11 = vsyncpa [#allocation3], 0
    %12 = vsyncpa [#allocation4], 0
    // Predicated region
    $region2: #{tpu_custom_call.1} parent=1 // pred_check
      _
    $region3: #{tpu_custom_call.1} parent=1 // pred_check_branch
      %14 = sbr.rel (0) target = $region5
    $region4: #{tpu_custom_call.1} parent=1 // pred_region
      _
    $region5: #{tpu_custom_call.1} parent=1 // pred_fallthru
      _
    // Predicated region
    $region6: #{tpu_custom_call.1} parent=1 // pred_check
      _
    $region7: #{tpu_custom_call.1} parent=1 // pred_check_branch
      %16 = sbr.rel (0) target = $region9
    $region8: #{tpu_custom_call.1} parent=1 // pred_region
      _
    $region9: #{tpu_custom_call.1} parent=1 // pred_fallthru
      _
    // Predicated region
    $region10: #{tpu_custom_call.1} parent=1 // pred_check
      _
    $region11: #{tpu_custom_call.1} parent=1 // pred_check_branch
      %18 = sbr.rel (0) target = $region13
    $region12: #{tpu_custom_call.1} parent=1 // pred_region
      %20 = vsyncadd [#allocation3], 0
      %s21 = sshll.u32 %s2, 4
      %s22 = int_to_ptr.hbm [resolvable:$true] %s21
      %s23 = sshll.u32 [#allocation2], 4
      %s24 = int_to_ptr.vmem [resolvable:$true] %s23
      %29 = dma.hbm_to_vmem [thread:$0]  %s22, 256, %s24, [#allocation3], 64, 64, 4
    $region13: #{tpu_custom_call.1} parent=1 // pred_fallthru
      _
    // Predicated region
    $region14: #{tpu_custom_call.1} parent=1 // pred_check
      _
    $region15: #{tpu_custom_call.1} parent=1 // pred_check_branch
      %31 = sbr.rel (0) target = $region17
    $region16: #{tpu_custom_call.1} parent=1 // pred_region
      _
    $region17: #{tpu_custom_call.1} parent=1 // pred_fallthru
      _
    // Predicated region
    $region18: #{tpu_custom_call.1} parent=1 // pred_check
      _
    $region19: #{tpu_custom_call.1} parent=1 // pred_check_branch
      %33 = sbr.rel (0) target = $region21
    $region20: #{tpu_custom_call.1} parent=1 // pred_region
      %35 = dma.done [#allocation3], 256
    $region21: #{tpu_custom_call.1} parent=1 // pred_fallthru
      _
    %v37 = vld [vmem:[%s1] sm:$0xff]
    %v38 = vpack.c.bf16 %v37, %v37
    %v39 = vld [vmem:[#allocation2] sm:$0xf]
    %v40 = vld [vmem:[#allocation2 + $0x4] sm:$0xf]
    %v41 = vld [vmem:[#allocation2 + $0x8] sm:$0xf]
    %v42 = vld [vmem:[#allocation2 + $0xc] sm:$0xf]
    %v47 = vunpack.c.l.b16 %v39
    %v48 = vunpack.c.l.b16 %v40
    %v49 = vunpack.c.l.b16 %v41
    %v50 = vunpack.c.l.b16 %v42
    %v51 = vpack.c.b16 %v48, %v47
    %v52 = vpack.c.b16 %v50, %v49
    %vm55 = vcmask 261120
    %v57 = vsel %vm55, %v38, 0
    %59 = vmatpush.bf16.msra.mxu0 0
    %60 = vmatpush.bf16.msra.mxu0 0
    %61 = vmatpush.bf16.msra.mxu0 0
    %62 = vmatpush.bf16.msra.mxu0 0
    %63 = vmatpush.bf16.msra.mxu0 0
    %64 = vmatpush.bf16.msra.mxu0 0
    %65 = vmatpush.bf16.msra.mxu0 %v52
    %66 = vmatpush.bf16.msra.mxu0 %v51
    %67 = vmatmul.bf16.gmra.mxu0 %v57
    %v68 = vpop.f32.mrf.mxu0
    %v69 = vadd.f32 0.0, %v68
    %v70 = vpop.f32.mrf.mxu0
    %71 = vdwg.mxu0
    %v72 = vmul.f32 %v37, %v37
    %v73 = vsel %vm55, %v72, 0.0
    %74 = vadd.xlane.f32.xlu0 %v73
    %v75 = vpop.xlane.xlu0 %74
    %v76 = vmul.f32 %v69, 2.0
    %v77 = vsub.f32 %v75, %v76
    %v78 = vld [vmem:[%s3] sm:$0x1]
    %v80 = vperm.slane %v78, 0
    %v82 = vadd.f32 %v77, %v80
    %v83 = vmul.f32 %v82, 0.03125
    %v84 = vmax.f32 %v83, 0.0
    %v85 = vsub.f32 %v69, %v84
    %vm86 = vcmask 39936
    %87 = vst.msk [vmem:[#allocation5] sm:$0xff] %vm86, %v85
    %v88 = vld [vmem:[%s0] sm:$0xff]
    %v89 = vlaneseq
    %v90 = vshrl.u32 %v89, 7
    %s91 = smul.u32 0, 8
    %v92 = vstv %s91
    %v93 = vadd.s32 %v90, %v92
    %vm94 = vcmp.lt.s32.totalorder %v93, 8
    %v95 = vsel %vm94, 1, 0
    %v96 = vcvt.s32.f32 %v95
    %v97 = vlaneseq
    %v98 = vand.u32 %v97, 127
    %99 = vset.pattern.permute.xlu0 0
    %100 = vperm.xlu0 %99, %v88
    %v101 = vpop.permute.xlu0 %100
    %vm102 = vcmp.eq.s32.totalorder %v101, %v98
    %v103 = vsel %vm102, 1, 0
    %v104 = vcvt.s32.f32 %v103
    %v105 = vmul.f32 %v104, %v96
    %v106 = vsub.f32 %v96, %v105
    %108 = vset.pattern.permute.xlu0 4
    %109 = vperm.xlu0 %108, %v85
    %v110 = vpop.permute.xlu0 %109
    %v112 = vmax.f32 %v110, %v85
    %v113 = vsub.f32 %v110, %v85
    %v114 = vand.u32 2147483647, %v113
    %v115 = vsub.f32 0.0, %v114
    %v116 = vmul.f32 %v115, 1.442695
    %v117 = vpow.pop %v116
    %v118 = vadd.f32 %v117, 1.0
    %v119 = vlog2.pop %v118
    %v120 = vmul.f32 %v119, 0.6931472
    %v121 = vmul.f32 -0.5, %v117
    %v122 = vadd.f32 %v121, 1.0
    %v123 = vmul.f32 %v122, %v117
    %v124 = vand.u32 2147483647, %v117
    %vm125 = vcmp.lt.f32.partialorder %v124, 0.0004427343
    %v126 = vsel %vm125, %v123, %v120
    %v127 = vadd.f32 %v112, %v126
    %v128 = vmul.f32 %v105, %v85
    %v129 = vmul.f32 %v106, %v110
    %v130 = vadd.f32 %v128, %v129
    %v131 = vmul.f32 %v96, %v127
    %v132 = vsub.f32 %v131, %v130
    %v133 = vsub.f32 %v84, 0.5
    %v134 = vadd.f32 %v133, 1.0
    %v135 = vmax.f32 %v134, 0.0
    %137 = vset.pattern.permute.xlu0 4
    %138 = vperm.xlu0 %137, %v135
    %v139 = vpop.permute.xlu0 %138
    %v141 = vmul.f32 %v106, %v139
    %v142 = vsub.f32 %v84, 1.0
    %v143 = vadd.f32 %v142, 1.0
    %v144 = vmax.f32 %v143, 0.0
    %v145 = vmul.f32 %v105, %v144
    %v146 = vsub.f32 1.0, %v84
    %v147 = vadd.f32 %v146, 1.0
    %v148 = vmax.f32 %v147, 0.0
    %v149 = vmul.f32 %v106, %v148
    %v150 = vrot.slane %v132, 4
    %v151 = vadd.f32 %v132, %v150
    %v152 = vrot.slane %v151, 2
    %v153 = vadd.f32 %v151, %v152
    %v154 = vrot.slane %v153, 1
    %v155 = vadd.f32 %v153, %v154
    %v156 = vrot.slane %v105, 4
    %v157 = vadd.f32 %v105, %v156
    %v158 = vrot.slane %v157, 2
    %v159 = vadd.f32 %v157, %v158
    %v160 = vrot.slane %v159, 1
    %v161 = vadd.f32 %v159, %v160
    %v162 = vrot.slane %v141, 4
    %v163 = vadd.f32 %v141, %v162
    %v164 = vrot.slane %v163, 2
    %v165 = vadd.f32 %v163, %v164
    %v166 = vrot.slane %v165, 1
    %v167 = vadd.f32 %v165, %v166
    %v168 = vrot.slane %v145, 4
    %v169 = vadd.f32 %v145, %v168
    %v170 = vrot.slane %v169, 2
    %v171 = vadd.f32 %v169, %v170
    %v172 = vrot.slane %v171, 1
    %v173 = vadd.f32 %v171, %v172
    %v174 = vrot.slane %v149, 4
    %v175 = vadd.f32 %v149, %v174
    %v176 = vrot.slane %v175, 2
    %v177 = vadd.f32 %v175, %v176
    %v178 = vrot.slane %v177, 1
    %v179 = vadd.f32 %v177, %v178
    %vm180 = vcmask 1040384
    %v181 = vsel %vm180, %v155, %v161
    %vm182 = vcmask 1041408
    %v183 = vsel %vm182, %v181, %v167
    %vm184 = vcmask 1042432
    %v185 = vsel %vm184, %v183, %v173
    %vm186 = vcmask 1043456
    %v187 = vsel %vm186, %v185, %v179
    %188 = vst [vmem:[%s5] sm:$0x1f] %v187
    // Predicated region
    $region22: #{tpu_custom_call.1} parent=1 // pred_check
      _
    $region23: #{tpu_custom_call.1} parent=1 // pred_check_branch
      %190 = sbr.rel (0) target = $region25
    $region24: #{tpu_custom_call.1} parent=1 // pred_region
      %192 = vsyncadd [#allocation4], 0
      %s194 = sshll.u32 [#allocation5], 4
      %s195 = int_to_ptr.vmem [resolvable:$true] %s194
      %s196 = sshll.u32 %s4, 4
      %s197 = int_to_ptr.hbm [resolvable:$true] %s196
      %199 = dma.vmem_to_hbm [thread:$0]  %s195, 128, %s197, [#allocation4]
    $region25: #{tpu_custom_call.1} parent=1 // pred_fallthru
      _
    // Predicated region
    $region26: #{tpu_custom_call.1} parent=1 // pred_check
      _
    $region27: #{tpu_custom_call.1} parent=1 // pred_check_branch
      %201 = sbr.rel (0) target = $region29
    $region28: #{tpu_custom_call.1} parent=1 // pred_region
      _
    $region29: #{tpu_custom_call.1} parent=1 // pred_fallthru
      _
    // Predicated region
    $region30: #{tpu_custom_call.1} parent=1 // pred_check
      _
    $region31: #{tpu_custom_call.1} parent=1 // pred_check_branch
      %203 = sbr.rel (0) target = $region33
    $region32: #{tpu_custom_call.1} parent=1 // pred_region
      %205 = dma.done [#allocation4], 128
    $region33: #{tpu_custom_call.1} parent=1 // pred_fallthru
      _
    // Predicated region
    $region34: #{tpu_custom_call.1} parent=1 // pred_check
      _
    $region35: #{tpu_custom_call.1} parent=1 // pred_check_branch
      %207 = sbr.rel (0) target = $region37
    $region36: #{tpu_custom_call.1} parent=1 // pred_region
      _
    $region37: #{tpu_custom_call.1} parent=1 // pred_fallthru
      _
    %208 = vsyncpa [#allocation3], 1
    %209 = vsyncpa [#allocation4], 1

</llo_original>
